<compile_context>
chip_gen: v5e
topology: v5e:2x2
jax: 0.10.0
libtpu: 0.0.40
codegen_flags: <defaults>
</compile_context>

<pallas_src>
import jax
import jax.numpy as jnp
from jax.experimental import pallas as pl
from jax.experimental.pallas import tpu as pltpu


def _round_up(x: int, m: int) -> int:
    return (x + m - 1) // m * m


def comparator_kernel(x1_ref, x2_ref, w_ref, b_ref, out_ref):
    tb = x1_ref.shape[0]

    w = w_ref[...]
    b = b_ref[...]  # (1, H) f32

    # Tokenizer projections: two MXU calls, f32 accumulation.  (No in-kernel
    # concat: that materialized a (2*tb, D) VMEM copy every step.)
    t1 = jnp.dot(x1_ref[...], w, preferred_element_type=jnp.float32) + b  # (tb, H)
    t2 = jnp.dot(x2_ref[...], w, preferred_element_type=jnp.float32) + b  # (tb, H)

    # Cosine similarity per row (reduce over the lane/embedding axis).
    dot = jnp.sum(t1 * t2, axis=-1)   # (tb,)
    s1 = jnp.sum(t1 * t1, axis=-1)
    s2 = jnp.sum(t2 * t2, axis=-1)
    # 1 / max(||t1||*||t2||, 1e-8) == rsqrt(max(s1*s2, 1e-16)); rsqrt -> EUP slot.
    inv = jax.lax.rsqrt(jnp.maximum(s1 * s2, 1e-16))
    cos = dot * inv

    # Comparator output is 1 - (1 - cos) == cos.  Lane-dense (1, tb) store.
    out_ref[...] = cos.reshape(1, tb)


def comparator(x1, x2, w, b, *, tb=1024, vmem_limit_bytes=None):
    """Comparator forward: cosine similarity of tokenizer(x1), tokenizer(x2).

    x1, x2: (B, D)   w: (D, H)   b: (H,)   ->   (B, 1) float32
    Inputs may be f32 or bf16 (no wrapper-side cast is performed).
    """
    B, D = x1.shape
    H = w.shape[1]

    # --- Tile selection (all 128-aligned so the output row is never masked) ---
    tb = _round_up(max(128, tb), 128)
    B_pad0 = _round_up(B, 128)
    tb = min(tb, B_pad0)
    # Cap tb so the two (tb, H) f32 intermediates stay within ~4 MiB.
    interm_cap = max(128, (4 * 1024 * 1024 // (8 * H)) // 128 * 128)
    tb = min(tb, interm_cap)
    # v7x megacore: if everything would fit in one tile but the batch is big
    # enough, split into 2 parallel tiles so both TensorCores get work.
    if B_pad0 <= tb and B_pad0 >= 256:
        tb = _round_up(-(-B_pad0 // 2), 128)

    B_pad = _round_up(B, tb)
    num_tiles = B_pad // tb

    if B_pad != B:
        pad = B_pad - B
        x1 = jnp.pad(x1, ((0, pad), (0, 0)))
        x2 = jnp.pad(x2, ((0, pad), (0, 0)))

    b2d = b.reshape(1, H).astype(jnp.float32)

    in_itemsize = jnp.dtype(x1.dtype).itemsize
    w_itemsize = jnp.dtype(w.dtype).itemsize

    if vmem_limit_bytes is None:
        # Derive from the actual per-step footprint (double-buffered inputs /
        # output, resident W/b, f32 intermediates + temps), with 2x headroom.
        step_bytes = (
            2 * 2 * tb * D * in_itemsize          # x1/x2 tiles, double-buffered
            + 2 * (D * H * w_itemsize + H * 4)    # W + bias (double-buffered)
            + 2 * tb * 4                          # output row, double-buffered
            + 3 * tb * H * 4                      # t1/t2 + elementwise temps (f32)
        )
        vmem_limit_bytes = min(max(2 * step_bytes, 4 << 20), 48 << 20)

    cost = pl.CostEstimate(
        flops=4 * B_pad * D * H,                  # two (B, D) x (D, H) matmuls
        transcendentals=B_pad,                    # one rsqrt per row
        bytes_accessed=(2 * B_pad * D * in_itemsize
                        + D * H * w_itemsize + H * 4
                        + B_pad * 4),
    )

    out_row = pl.pallas_call(
        comparator_kernel,
        out_shape=jax.ShapeDtypeStruct((1, B_pad), jnp.float32),
        grid_spec=pltpu.PrefetchScalarGridSpec(
            num_scalar_prefetch=0,
            grid=(num_tiles,),
            in_specs=[
                pl.BlockSpec((tb, D), lambda i: (i, 0)),   # x1 tile
                pl.BlockSpec((tb, D), lambda i: (i, 0)),   # x2 tile
                pl.BlockSpec((D, H), lambda i: (0, 0)),    # tokenizer weight (resident)
                pl.BlockSpec((1, H), lambda i: (0, 0)),    # tokenizer bias (resident)
            ],
            out_specs=pl.BlockSpec((1, tb), lambda i: (0, i)),  # lane-dense output row
        ),
        compiler_params=pltpu.CompilerParams(
            dimension_semantics=("parallel",),
            vmem_limit_bytes=int(vmem_limit_bytes),
        ),
        cost_estimate=cost,
    )(x1, x2, w, b2d)

    # Layout plumbing only: (1, B_pad) -> (B, 1).
    return out_row[0, :B].reshape(B, 1)


def comparator_ref(x1, x2, w, b):
    t1 = x1.astype(jnp.float32) @ w.astype(jnp.float32) + b
    t2 = x2.astype(jnp.float32) @ w.astype(jnp.float32) + b
    dot = jnp.sum(t1 * t2, axis=-1, keepdims=True)
    denom = jnp.maximum(
        jnp.linalg.norm(t1, axis=-1, keepdims=True)
        * jnp.linalg.norm(t2, axis=-1, keepdims=True),
        1e-8,
    )
    cos = dot / denom
    return 1.0 - (1.0 - cos)


if __name__ == "__main__":
    key = jax.random.PRNGKey(0)
    k1, k2, kw, kb = jax.random.split(key, 4)

    D_IN, HIDDEN = 32, 128
    # Deterministic synthetic tokenizer parameters.
    w = jax.random.normal(kw, (D_IN, HIDDEN), dtype=jnp.float32) * 0.02
    b = jax.random.normal(kb, (HIDDEN,), dtype=jnp.float32) * 0.01

    # Case 1: small batch (pads to a single 128-row tile; unmasked lane store).
    B = 8
    x1 = jax.random.normal(k1, (B, D_IN), dtype=jnp.float32)
    x2 = jax.random.normal(k2, (B, D_IN), dtype=jnp.float32)
    out = comparator(x1, x2, w, b)
    jax.block_until_ready(out)
    ref = comparator_ref(x1, x2, w, b)
    assert out.shape == (B, 1)
    assert jnp.allclose(out, ref, atol=1e-5, rtol=1e-5), (out, ref)

    # Case 2: awkward batch (pads to 256 and splits into 2 parallel tiles).
    B = 200
    x1 = jax.random.normal(k1, (B, D_IN), dtype=jnp.float32)
    x2 = jax.random.normal(k2, (B, D_IN), dtype=jnp.float32)
    out = comparator(x1, x2, w, b)
    jax.block_until_ready(out)
    ref = comparator_ref(x1, x2, w, b)
    assert out.shape == (B, 1)
    assert jnp.allclose(out, ref, atol=1e-5, rtol=1e-5)

    # Case 3: multi-tile batch with an explicit smaller tile size.
    B = 384
    x1 = jax.random.normal(k1, (B, D_IN), dtype=jnp.float32)
    x2 = jax.random.normal(k2, (B, D_IN), dtype=jnp.float32)
    out = comparator(x1, x2, w, b, tb=128)
    jax.block_until_ready(out)
    ref = comparator_ref(x1, x2, w, b)
    assert out.shape == (B, 1)
    assert jnp.allclose(out, ref, atol=1e-5, rtol=1e-5)

    # Case 4: inputs/weights that already arrive in bf16 (no wrapper cast;
    # cosine math stays f32 in-kernel).  Looser tolerance.
    x1_bf = x1.astype(jnp.bfloat16)
    x2_bf = x2.astype(jnp.bfloat16)
    w_bf = w.astype(jnp.bfloat16)
    out_bf = comparator(x1_bf, x2_bf, w_bf, b)
    jax.block_until_ready(out_bf)
    assert jnp.allclose(out_bf, ref, atol=2e-2, rtol=2e-2)

    print("KERNEL_OK")
</pallas_src>

<mosaic_0001>
module attributes {stable_mosaic.version = 11 : i64} {
  func.func @comparator_kernel(%arg0: i32, %arg1: memref<128x32xf32, #tpu.memory_space<vmem>>, %arg2: memref<128x32xf32, #tpu.memory_space<vmem>>, %arg3: memref<32x128xf32, #tpu.memory_space<vmem>>, %arg4: memref<1x128xf32, #tpu.memory_space<vmem>>, %arg5: memref<1x128xf32, #tpu.memory_space<vmem>>) attributes {dimension_semantics = [#tpu.dimension_semantics<parallel>], iteration_bounds = array<i64: 1>, scalar_prefetch = 0 : i64, scratch_operands = 0 : i64, tpu.core_type = #tpu.core_type<tc>, window_params = [{transform_indices = @transform_0, window_bounds = array<i64: 128, 32>}, {transform_indices = @transform_1, window_bounds = array<i64: 128, 32>}, {pipeline_mode = #tpu.pipeline_mode<synchronous>, transform_indices = @transform_2, window_bounds = array<i64: 32, 128>}, {pipeline_mode = #tpu.pipeline_mode<synchronous>, transform_indices = @transform_3, window_bounds = array<i64: 1, 128>}, {transform_indices = @transform_4, window_bounds = array<i64: 1, 128>}]} {
    %c0 = arith.constant 0 : index
    %c0_0 = arith.constant 0 : index
    %0 = vector.load %arg3[%c0, %c0_0] : memref<32x128xf32, #tpu.memory_space<vmem>>, vector<32x128xf32>
    %c0_1 = arith.constant 0 : index
    %c0_2 = arith.constant 0 : index
    %1 = vector.load %arg4[%c0_1, %c0_2] : memref<1x128xf32, #tpu.memory_space<vmem>>, vector<1x128xf32>
    %c0_3 = arith.constant 0 : index
    %c0_4 = arith.constant 0 : index
    %2 = vector.load %arg1[%c0_3, %c0_4] : memref<128x32xf32, #tpu.memory_space<vmem>>, vector<128x32xf32>
    %cst = arith.constant dense<0.000000e+00> : vector<128x128xf32>
    %3 = tpu.matmul %2, %0, %cst {dimension_numbers = #tpu.dot_dimension_numbers<[1], [0], [0], [1], [0, 0, 1, 1], [], []>} : vector<128x32xf32>, vector<32x128xf32>, vector<128x128xf32> -> vector<128x128xf32>
    %4 = vector.broadcast %1 : vector<1x128xf32> to vector<128x128xf32>
    %5 = arith.addf %3, %4 : vector<128x128xf32>
    %c0_5 = arith.constant 0 : index
    %c0_6 = arith.constant 0 : index
    %6 = vector.load %arg2[%c0_5, %c0_6] : memref<128x32xf32, #tpu.memory_space<vmem>>, vector<128x32xf32>
    %cst_7 = arith.constant dense<0.000000e+00> : vector<128x128xf32>
    %7 = tpu.matmul %6, %0, %cst_7 {dimension_numbers = #tpu.dot_dimension_numbers<[1], [0], [0], [1], [0, 0, 1, 1], [], []>} : vector<128x32xf32>, vector<32x128xf32>, vector<128x128xf32> -> vector<128x128xf32>
    %8 = vector.broadcast %1 : vector<1x128xf32> to vector<128x128xf32>
    %9 = arith.addf %7, %8 : vector<128x128xf32>
    %10 = arith.mulf %5, %9 : vector<128x128xf32>
    %cst_8 = arith.constant dense<0.000000e+00> : vector<128xf32>
    %11 = vector.multi_reduction <add>, %10, %cst_8 [1] : vector<128x128xf32> to vector<128xf32>
    %12 = arith.mulf %5, %5 : vector<128x128xf32>
    %cst_9 = arith.constant dense<0.000000e+00> : vector<128xf32>
    %13 = vector.multi_reduction <add>, %12, %cst_9 [1] : vector<128x128xf32> to vector<128xf32>
    %14 = arith.mulf %9, %9 : vector<128x128xf32>
    %cst_10 = arith.constant dense<0.000000e+00> : vector<128xf32>
    %15 = vector.multi_reduction <add>, %14, %cst_10 [1] : vector<128x128xf32> to vector<128xf32>
    %16 = arith.mulf %13, %15 : vector<128xf32>
    %cst_11 = arith.constant 1.000000e-16 : f32
    %17 = vector.broadcast %cst_11 : f32 to vector<128xf32>
    %18 = arith.maximumf %16, %17 : vector<128xf32>
    %19 = math.rsqrt %18 : vector<128xf32>
    %20 = arith.mulf %11, %19 : vector<128xf32>
    %21 = vector.shape_cast %20 : vector<128xf32> to vector<1x128xf32>
    %c0_12 = arith.constant 0 : index
    %c0_13 = arith.constant 0 : index
    %22 = vector.load %arg5[%c0_12, %c0_13] : memref<1x128xf32, #tpu.memory_space<vmem>>, vector<1x128xf32>
    tpu.vector_store %arg5[%c0_12, %c0_13], %21 {strides = array<i32>} : memref<1x128xf32, #tpu.memory_space<vmem>>, vector<1x128xf32>,
    return
  }
  func.func @transform_0(%arg0: i32) -> (i32, i32) {
    %c0_i32 = arith.constant 0 : i32
    %c0_i32_0 = arith.constant 0 : i32
    return %arg0, %c0_i32 : i32, i32
  }
  func.func @transform_1(%arg0: i32) -> (i32, i32) {
    %c0_i32 = arith.constant 0 : i32
    %c0_i32_0 = arith.constant 0 : i32
    return %arg0, %c0_i32 : i32, i32
  }
  func.func @transform_2(%arg0: i32) -> (i32, i32) {
    %c0_i32 = arith.constant 0 : i32
    %c0_i32_0 = arith.constant 0 : i32
    %c0_i32_1 = arith.constant 0 : i32
    return %c0_i32, %c0_i32_0 : i32, i32
  }
  func.func @transform_3(%arg0: i32) -> (i32, i32) {
    %c0_i32 = arith.constant 0 : i32
    %c0_i32_0 = arith.constant 0 : i32
    %c0_i32_1 = arith.constant 0 : i32
    return %c0_i32, %c0_i32_0 : i32, i32
  }
  func.func @transform_4(%arg0: i32) -> (i32, i32) {
    %c0_i32 = arith.constant 0 : i32
    %c0_i32_0 = arith.constant 0 : i32
    return %c0_i32, %arg0 : i32, i32
  }
}

</mosaic_0001>

<llo_original>
// kernel: tpu_custom_call.1
$region0: #{tpu_custom_call.1}
  #allocation0 [shape = 'u32[]', space=smem, size = 0x4, offset = 0x4, fixed_abs, tag = 'smem constant byte address 0x4 - core index']
  #allocation1 [shape = 'u32[72,128]{1,0:T(1,128)}', space=vmem, size = 0x9000, scoped, tag = 'internal scratch']
  %s0 = inlined_call_operand.vmem [shape: f32[128,32], index: 0, kind: input, shape index: {}]
  %s1 = inlined_call_operand.vmem [shape: f32[128,32], index: 1, kind: input, shape index: {}]
  %s2 = inlined_call_operand.vmem [shape: f32[32,128], index: 2, kind: input, shape index: {}]
  %s3 = inlined_call_operand.vmem [shape: f32[1,128], index: 3, kind: input, shape index: {}]
  %s4 = inlined_call_operand.hbm [shape: f32[1,128], index: 4, kind: output, shape index: {}]
  %s5 = sld [smem:[#allocation0]]
  $region26: #{tpu_custom_call.1} parent=0
    _
  %s7 = ssub.s32 1, %s5
  %s8 = scalar_select 0, %s7, %s5
  $region1: #{tpu_custom_call.1} parent=0
    #allocation2 [shape = 'u8[512]{0}', space=vmem, size = 0x400, scoped, tag = 'output window, operand 0, single buffered']
    #allocation3 [shape = 's32[1]{0}', space=sflag, size = 0x4, scoped, tag = 'scoped memory for tpu_custom_call.1']
    %9 = vsyncpa [#allocation3], 0
    // Predicated region
    $region2: #{tpu_custom_call.1} parent=1 // pred_check
      _
    $region3: #{tpu_custom_call.1} parent=1 // pred_check_branch
      %11 = sbr.rel (0) target = $region5
    $region4: #{tpu_custom_call.1} parent=1 // pred_region
      _
    $region5: #{tpu_custom_call.1} parent=1 // pred_fallthru
      _
    // Predicated region
    $region6: #{tpu_custom_call.1} parent=1 // pred_check
      _
    $region7: #{tpu_custom_call.1} parent=1 // pred_check_branch
      %13 = sbr.rel (0) target = $region9
    $region8: #{tpu_custom_call.1} parent=1 // pred_region
      _
    $region9: #{tpu_custom_call.1} parent=1 // pred_fallthru
      _
    // Predicated region
    $region10: #{tpu_custom_call.1} parent=1 // pred_check
      _
    $region11: #{tpu_custom_call.1} parent=1 // pred_check_branch
      %15 = sbr.rel (0) target = $region13
    $region12: #{tpu_custom_call.1} parent=1 // pred_region
      _
    $region13: #{tpu_custom_call.1} parent=1 // pred_fallthru
      _
    // Predicated region
    $region14: #{tpu_custom_call.1} parent=1 // pred_check
      _
    $region15: #{tpu_custom_call.1} parent=1 // pred_check_branch
      %17 = sbr.rel (0) target = $region17
    $region16: #{tpu_custom_call.1} parent=1 // pred_region
      _
    $region17: #{tpu_custom_call.1} parent=1 // pred_fallthru
      _
    %v18 = vld [vmem:[%s2] sm:$0xff]
    %v19 = vld [vmem:[%s2 + $0x8] sm:$0xff]
    %v20 = vld [vmem:[%s2 + $0x10] sm:$0xff]
    %v21 = vld [vmem:[%s2 + $0x18] sm:$0xff]
    %v22 = vld [vmem:[%s3] sm:$0x1]
    %v23 = vld [vmem:[%s0] sm:$0xff]
    %v24 = vld [vmem:[%s0 + $0x8] sm:$0xff]
    %v25 = vld [vmem:[%s0 + $0x10] sm:$0xff]
    %v26 = vld [vmem:[%s0 + $0x18] sm:$0xff]
    %v27 = vld [vmem:[%s0 + $0x20] sm:$0xff]
    %v28 = vld [vmem:[%s0 + $0x28] sm:$0xff]
    %v29 = vld [vmem:[%s0 + $0x30] sm:$0xff]
    %v30 = vld [vmem:[%s0 + $0x38] sm:$0xff]
    %v31 = vld [vmem:[%s0 + $0x40] sm:$0xff]
    %v32 = vld [vmem:[%s0 + $0x48] sm:$0xff]
    %v33 = vld [vmem:[%s0 + $0x50] sm:$0xff]
    %v34 = vld [vmem:[%s0 + $0x58] sm:$0xff]
    %v35 = vld [vmem:[%s0 + $0x60] sm:$0xff]
    %v36 = vld [vmem:[%s0 + $0x68] sm:$0xff]
    %v37 = vld [vmem:[%s0 + $0x70] sm:$0xff]
    %v38 = vld [vmem:[%s0 + $0x78] sm:$0xff]
    %v40 = vperm.slane %v22, 0
    %vm42 = vcmask 261120
    %v44 = vsel %vm42, %v23, 0
    %v47 = vsel %vm42, %v24, 0
    %v50 = vsel %vm42, %v25, 0
    %v53 = vsel %vm42, %v26, 0
    %v56 = vsel %vm42, %v27, 0
    %v59 = vsel %vm42, %v28, 0
    %v62 = vsel %vm42, %v29, 0
    %v65 = vsel %vm42, %v30, 0
    %v68 = vsel %vm42, %v31, 0
    %v71 = vsel %vm42, %v32, 0
    %v74 = vsel %vm42, %v33, 0
    %v77 = vsel %vm42, %v34, 0
    %v80 = vsel %vm42, %v35, 0
    %v83 = vsel %vm42, %v36, 0
    %v86 = vsel %vm42, %v37, 0
    %v89 = vsel %vm42, %v38, 0
    %91 = vmatpush.msra.mxu0 0.0
    %92 = vmatpush.msra.mxu0 0.0
    %93 = vmatpush.msra.mxu0 0.0
    %94 = vmatpush.msra.mxu0 0.0
    %95 = vmatpush.msra.mxu0 0.0
    %96 = vmatpush.msra.mxu0 0.0
    %97 = vmatpush.msra.mxu0 0.0
    %98 = vmatpush.msra.mxu0 0.0
    %99 = vmatpush.msra.mxu0 0.0
    %100 = vmatpush.msra.mxu0 0.0
    %101 = vmatpush.msra.mxu0 0.0
    %102 = vmatpush.msra.mxu0 0.0
    %103 = vmatpush.msra.mxu0 %v21
    %104 = vmatpush.msra.mxu0 %v20
    %105 = vmatpush.msra.mxu0 %v19
    %106 = vmatpush.msra.mxu0 %v18
    %107 = vmatmul.f32.gmra.mxu0 %v44
    %v108 = vpop.f32.mrf.mxu0
    %v109 = vadd.f32 %v40, %v108
    %110 = vmatmul.f32.gmra.mxu0 %v47
    %v111 = vpop.f32.mrf.mxu0
    %v112 = vadd.f32 %v40, %v111
    %113 = vmatmul.f32.gmra.mxu0 %v50
    %v114 = vpop.f32.mrf.mxu0
    %v115 = vadd.f32 %v40, %v114
    %116 = vmatmul.f32.gmra.mxu0 %v53
    %v117 = vpop.f32.mrf.mxu0
    %v118 = vadd.f32 %v40, %v117
    %119 = vmatmul.f32.gmra.mxu0 %v56
    %v120 = vpop.f32.mrf.mxu0
    %v121 = vadd.f32 %v40, %v120
    %122 = vmatmul.f32.gmra.mxu0 %v59
    %v123 = vpop.f32.mrf.mxu0
    %v124 = vadd.f32 %v40, %v123
    %125 = vmatmul.f32.gmra.mxu0 %v62
    %v126 = vpop.f32.mrf.mxu0
    %v127 = vadd.f32 %v40, %v126
    %128 = vmatmul.f32.gmra.mxu0 %v65
    %v129 = vpop.f32.mrf.mxu0
    %v130 = vadd.f32 %v40, %v129
    %131 = vmatmul.f32.gmra.mxu0 %v68
    %v132 = vpop.f32.mrf.mxu0
    %v133 = vadd.f32 %v40, %v132
    %134 = vmatmul.f32.gmra.mxu0 %v71
    %v135 = vpop.f32.mrf.mxu0
    %v136 = vadd.f32 %v40, %v135
    %137 = vmatmul.f32.gmra.mxu0 %v74
    %v138 = vpop.f32.mrf.mxu0
    %v139 = vadd.f32 %v40, %v138
    %140 = vmatmul.f32.gmra.mxu0 %v77
    %v141 = vpop.f32.mrf.mxu0
    %v142 = vadd.f32 %v40, %v141
    %143 = vmatmul.f32.gmra.mxu0 %v80
    %v144 = vpop.f32.mrf.mxu0
    %v145 = vadd.f32 %v40, %v144
    %146 = vmatmul.f32.gmra.mxu0 %v83
    %v147 = vpop.f32.mrf.mxu0
    %v148 = vadd.f32 %v40, %v147
    %149 = vmatmul.f32.gmra.mxu0 %v86
    %v150 = vpop.f32.mrf.mxu0
    %v151 = vadd.f32 %v40, %v150
    %152 = vmatmul.f32.gmra.mxu0 %v89
    %v153 = vpop.f32.mrf.mxu0
    %v154 = vadd.f32 %v40, %v153
    %155 = vdwg.mxu0
    %v156 = vld [vmem:[%s1] sm:$0xff]
    %v157 = vld [vmem:[%s1 + $0x8] sm:$0xff]
    %v158 = vld [vmem:[%s1 + $0x10] sm:$0xff]
    %v159 = vld [vmem:[%s1 + $0x18] sm:$0xff]
    %v160 = vld [vmem:[%s1 + $0x20] sm:$0xff]
    %v161 = vld [vmem:[%s1 + $0x28] sm:$0xff]
    %v162 = vld [vmem:[%s1 + $0x30] sm:$0xff]
    %v163 = vld [vmem:[%s1 + $0x38] sm:$0xff]
    %v164 = vld [vmem:[%s1 + $0x40] sm:$0xff]
    %v165 = vld [vmem:[%s1 + $0x48] sm:$0xff]
    %v166 = vld [vmem:[%s1 + $0x50] sm:$0xff]
    %v167 = vld [vmem:[%s1 + $0x58] sm:$0xff]
    %v168 = vld [vmem:[%s1 + $0x60] sm:$0xff]
    %v169 = vld [vmem:[%s1 + $0x68] sm:$0xff]
    %v170 = vld [vmem:[%s1 + $0x70] sm:$0xff]
    %v171 = vld [vmem:[%s1 + $0x78] sm:$0xff]
    %v173 = vsel %vm42, %v156, 0
    %v176 = vsel %vm42, %v157, 0
    %v179 = vsel %vm42, %v158, 0
    %v182 = vsel %vm42, %v159, 0
    %v185 = vsel %vm42, %v160, 0
    %v188 = vsel %vm42, %v161, 0
    %v191 = vsel %vm42, %v162, 0
    %v194 = vsel %vm42, %v163, 0
    %v197 = vsel %vm42, %v164, 0
    %v200 = vsel %vm42, %v165, 0
    %v203 = vsel %vm42, %v166, 0
    %v206 = vsel %vm42, %v167, 0
    %v209 = vsel %vm42, %v168, 0
    %v212 = vsel %vm42, %v169, 0
    %v215 = vsel %vm42, %v170, 0
    %v218 = vsel %vm42, %v171, 0
    %220 = vmatpush.msra.mxu0 0.0
    %221 = vmatpush.msra.mxu0 0.0
    %222 = vmatpush.msra.mxu0 0.0
    %223 = vmatpush.msra.mxu0 0.0
    %224 = vmatpush.msra.mxu0 0.0
    %225 = vmatpush.msra.mxu0 0.0
    %226 = vmatpush.msra.mxu0 0.0
    %227 = vmatpush.msra.mxu0 0.0
    %228 = vmatpush.msra.mxu0 0.0
    %229 = vmatpush.msra.mxu0 0.0
    %230 = vmatpush.msra.mxu0 0.0
    %231 = vmatpush.msra.mxu0 0.0
    %232 = vmatpush.msra.mxu0 %v21
    %233 = vmatpush.msra.mxu0 %v20
    %234 = vmatpush.msra.mxu0 %v19
    %235 = vmatpush.msra.mxu0 %v18
    %236 = vmatmul.f32.gmra.mxu0 %v173
    %v237 = vpop.f32.mrf.mxu0
    %v238 = vadd.f32 %v40, %v237
    %239 = vmatmul.f32.gmra.mxu0 %v176
    %v240 = vpop.f32.mrf.mxu0
    %v241 = vadd.f32 %v40, %v240
    %242 = vmatmul.f32.gmra.mxu0 %v179
    %v243 = vpop.f32.mrf.mxu0
    %v244 = vadd.f32 %v40, %v243
    %245 = vmatmul.f32.gmra.mxu0 %v182
    %v246 = vpop.f32.mrf.mxu0
    %v247 = vadd.f32 %v40, %v246
    %248 = vmatmul.f32.gmra.mxu0 %v185
    %v249 = vpop.f32.mrf.mxu0
    %v250 = vadd.f32 %v40, %v249
    %251 = vmatmul.f32.gmra.mxu0 %v188
    %v252 = vpop.f32.mrf.mxu0
    %v253 = vadd.f32 %v40, %v252
    %254 = vmatmul.f32.gmra.mxu0 %v191
    %v255 = vpop.f32.mrf.mxu0
    %v256 = vadd.f32 %v40, %v255
    %257 = vmatmul.f32.gmra.mxu0 %v194
    %v258 = vpop.f32.mrf.mxu0
    %v259 = vadd.f32 %v40, %v258
    %260 = vmatmul.f32.gmra.mxu0 %v197
    %v261 = vpop.f32.mrf.mxu0
    %v262 = vadd.f32 %v40, %v261
    %263 = vmatmul.f32.gmra.mxu0 %v200
    %v264 = vpop.f32.mrf.mxu0
    %v265 = vadd.f32 %v40, %v264
    %266 = vmatmul.f32.gmra.mxu0 %v203
    %v267 = vpop.f32.mrf.mxu0
    %v268 = vadd.f32 %v40, %v267
    %269 = vmatmul.f32.gmra.mxu0 %v206
    %v270 = vpop.f32.mrf.mxu0
    %v271 = vadd.f32 %v40, %v270
    %272 = vmatmul.f32.gmra.mxu0 %v209
    %v273 = vpop.f32.mrf.mxu0
    %v274 = vadd.f32 %v40, %v273
    %275 = vmatmul.f32.gmra.mxu0 %v212
    %v276 = vpop.f32.mrf.mxu0
    %v277 = vadd.f32 %v40, %v276
    %278 = vmatmul.f32.gmra.mxu0 %v215
    %v279 = vpop.f32.mrf.mxu0
    %v280 = vadd.f32 %v40, %v279
    %281 = vmatmul.f32.gmra.mxu0 %v218
    %v282 = vpop.f32.mrf.mxu0
    %v283 = vadd.f32 %v40, %v282
    %284 = vdwg.mxu0
    %v285 = vmul.f32 %v109, %v238
    %v286 = vmul.f32 %v112, %v241
    %v287 = vmul.f32 %v115, %v244
    %v288 = vmul.f32 %v118, %v247
    %v289 = vmul.f32 %v121, %v250
    %v290 = vmul.f32 %v124, %v253
    %v291 = vmul.f32 %v127, %v256
    %v292 = vmul.f32 %v130, %v259
    %v293 = vmul.f32 %v133, %v262
    %v294 = vmul.f32 %v136, %v265
    %v295 = vmul.f32 %v139, %v268
    %v296 = vmul.f32 %v142, %v271
    %v297 = vmul.f32 %v145, %v274
    %v298 = vmul.f32 %v148, %v277
    %v299 = vmul.f32 %v151, %v280
    %v300 = vmul.f32 %v154, %v283
    %301 = vadd.xlane.f32.xlu0 %v285
    %v302 = vpop.xlane.xlu0 %301
    %303 = vadd.xlane.f32.xlu0 %v286
    %v304 = vpop.xlane.xlu0 %303
    %305 = vadd.xlane.f32.xlu0 %v287
    %v306 = vpop.xlane.xlu0 %305
    %307 = vadd.xlane.f32.xlu0 %v288
    %v308 = vpop.xlane.xlu0 %307
    %309 = vadd.xlane.f32.xlu0 %v289
    %v310 = vpop.xlane.xlu0 %309
    %311 = vadd.xlane.f32.xlu0 %v290
    %v312 = vpop.xlane.xlu0 %311
    %313 = vadd.xlane.f32.xlu0 %v291
    %v314 = vpop.xlane.xlu0 %313
    %315 = vadd.xlane.f32.xlu0 %v292
    %v316 = vpop.xlane.xlu0 %315
    %317 = vadd.xlane.f32.xlu0 %v293
    %v318 = vpop.xlane.xlu0 %317
    %319 = vadd.xlane.f32.xlu0 %v294
    %v320 = vpop.xlane.xlu0 %319
    %321 = vadd.xlane.f32.xlu0 %v295
    %v322 = vpop.xlane.xlu0 %321
    %323 = vadd.xlane.f32.xlu0 %v296
    %v324 = vpop.xlane.xlu0 %323
    %325 = vadd.xlane.f32.xlu0 %v297
    %v326 = vpop.xlane.xlu0 %325
    %327 = vadd.xlane.f32.xlu0 %v298
    %v328 = vpop.xlane.xlu0 %327
    %329 = vadd.xlane.f32.xlu0 %v299
    %v330 = vpop.xlane.xlu0 %329
    %331 = vadd.xlane.f32.xlu0 %v300
    %v332 = vpop.xlane.xlu0 %331
    %v333 = vmul.f32 %v109, %v109
    %v334 = vmul.f32 %v112, %v112
    %v335 = vmul.f32 %v115, %v115
    %v336 = vmul.f32 %v118, %v118
    %v337 = vmul.f32 %v121, %v121
    %v338 = vmul.f32 %v124, %v124
    %v339 = vmul.f32 %v127, %v127
    %v340 = vmul.f32 %v130, %v130
    %v341 = vmul.f32 %v133, %v133
    %v342 = vmul.f32 %v136, %v136
    %v343 = vmul.f32 %v139, %v139
    %v344 = vmul.f32 %v142, %v142
    %v345 = vmul.f32 %v145, %v145
    %v346 = vmul.f32 %v148, %v148
    %v347 = vmul.f32 %v151, %v151
    %v348 = vmul.f32 %v154, %v154
    %349 = vadd.xlane.f32.xlu0 %v333
    %v350 = vpop.xlane.xlu0 %349
    %351 = vadd.xlane.f32.xlu0 %v334
    %v352 = vpop.xlane.xlu0 %351
    %353 = vadd.xlane.f32.xlu0 %v335
    %v354 = vpop.xlane.xlu0 %353
    %355 = vadd.xlane.f32.xlu0 %v336
    %v356 = vpop.xlane.xlu0 %355
    %357 = vadd.xlane.f32.xlu0 %v337
    %v358 = vpop.xlane.xlu0 %357
    %359 = vadd.xlane.f32.xlu0 %v338
    %v360 = vpop.xlane.xlu0 %359
    %361 = vadd.xlane.f32.xlu0 %v339
    %v362 = vpop.xlane.xlu0 %361
    %363 = vadd.xlane.f32.xlu0 %v340
    %v364 = vpop.xlane.xlu0 %363
    %365 = vadd.xlane.f32.xlu0 %v341
    %v366 = vpop.xlane.xlu0 %365
    %367 = vadd.xlane.f32.xlu0 %v342
    %v368 = vpop.xlane.xlu0 %367
    %369 = vadd.xlane.f32.xlu0 %v343
    %v370 = vpop.xlane.xlu0 %369
    %371 = vadd.xlane.f32.xlu0 %v344
    %v372 = vpop.xlane.xlu0 %371
    %373 = vadd.xlane.f32.xlu0 %v345
    %v374 = vpop.xlane.xlu0 %373
    %375 = vadd.xlane.f32.xlu0 %v346
    %v376 = vpop.xlane.xlu0 %375
    %377 = vadd.xlane.f32.xlu0 %v347
    %v378 = vpop.xlane.xlu0 %377
    %379 = vadd.xlane.f32.xlu0 %v348
    %v380 = vpop.xlane.xlu0 %379
    %v381 = vmul.f32 %v238, %v238
    %v382 = vmul.f32 %v241, %v241
    %v383 = vmul.f32 %v244, %v244
    %v384 = vmul.f32 %v247, %v247
    %v385 = vmul.f32 %v250, %v250
    %v386 = vmul.f32 %v253, %v253
    %v387 = vmul.f32 %v256, %v256
    %v388 = vmul.f32 %v259, %v259
    %v389 = vmul.f32 %v262, %v262
    %v390 = vmul.f32 %v265, %v265
    %v391 = vmul.f32 %v268, %v268
    %v392 = vmul.f32 %v271, %v271
    %v393 = vmul.f32 %v274, %v274
    %v394 = vmul.f32 %v277, %v277
    %v395 = vmul.f32 %v280, %v280
    %v396 = vmul.f32 %v283, %v283
    %397 = vadd.xlane.f32.xlu0 %v381
    %v398 = vpop.xlane.xlu0 %397
    %399 = vadd.xlane.f32.xlu0 %v382
    %v400 = vpop.xlane.xlu0 %399
    %401 = vadd.xlane.f32.xlu0 %v383
    %v402 = vpop.xlane.xlu0 %401
    %403 = vadd.xlane.f32.xlu0 %v384
    %v404 = vpop.xlane.xlu0 %403
    %405 = vadd.xlane.f32.xlu0 %v385
    %v406 = vpop.xlane.xlu0 %405
    %407 = vadd.xlane.f32.xlu0 %v386
    %v408 = vpop.xlane.xlu0 %407
    %409 = vadd.xlane.f32.xlu0 %v387
    %v410 = vpop.xlane.xlu0 %409
    %411 = vadd.xlane.f32.xlu0 %v388
    %v412 = vpop.xlane.xlu0 %411
    %413 = vadd.xlane.f32.xlu0 %v389
    %v414 = vpop.xlane.xlu0 %413
    %415 = vadd.xlane.f32.xlu0 %v390
    %v416 = vpop.xlane.xlu0 %415
    %417 = vadd.xlane.f32.xlu0 %v391
    %v418 = vpop.xlane.xlu0 %417
    %419 = vadd.xlane.f32.xlu0 %v392
    %v420 = vpop.xlane.xlu0 %419
    %421 = vadd.xlane.f32.xlu0 %v393
    %v422 = vpop.xlane.xlu0 %421
    %423 = vadd.xlane.f32.xlu0 %v394
    %v424 = vpop.xlane.xlu0 %423
    %425 = vadd.xlane.f32.xlu0 %v395
    %v426 = vpop.xlane.xlu0 %425
    %427 = vadd.xlane.f32.xlu0 %v396
    %v428 = vpop.xlane.xlu0 %427
    %v429 = vmul.f32 %v350, %v398
    %v430 = vmul.f32 %v352, %v400
    %v431 = vmul.f32 %v354, %v402
    %v432 = vmul.f32 %v356, %v404
    %v433 = vmul.f32 %v358, %v406
    %v434 = vmul.f32 %v360, %v408
    %v435 = vmul.f32 %v362, %v410
    %v436 = vmul.f32 %v364, %v412
    %v437 = vmul.f32 %v366, %v414
    %v438 = vmul.f32 %v368, %v416
    %v439 = vmul.f32 %v370, %v418
    %v440 = vmul.f32 %v372, %v420
    %v441 = vmul.f32 %v374, %v422
    %v442 = vmul.f32 %v376, %v424
    %v443 = vmul.f32 %v378, %v426
    %v444 = vmul.f32 %v380, %v428
    %v445 = vmax.f32 %v429, 1e-16
    %v446 = vmax.f32 %v430, 1e-16
    %v447 = vmax.f32 %v431, 1e-16
    %v448 = vmax.f32 %v432, 1e-16
    %v449 = vmax.f32 %v433, 1e-16
    %v450 = vmax.f32 %v434, 1e-16
    %v451 = vmax.f32 %v435, 1e-16
    %v452 = vmax.f32 %v436, 1e-16
    %v453 = vmax.f32 %v437, 1e-16
    %v454 = vmax.f32 %v438, 1e-16
    %v455 = vmax.f32 %v439, 1e-16
    %v456 = vmax.f32 %v440, 1e-16
    %v457 = vmax.f32 %v441, 1e-16
    %v458 = vmax.f32 %v442, 1e-16
    %v459 = vmax.f32 %v443, 1e-16
    %v460 = vmax.f32 %v444, 1e-16
    %v461 = vrsqrt.pop %v445
    %v462 = vmul.f32 %v461, %v445
    %v463 = vmul.f32 %v462, %v461
    %v464 = vmul.f32 0.5, %v463
    %v465 = vsub.f32 1.5, %v464
    %v466 = vmul.f32 %v461, %v465
    %vm467 = vweird.f32 %v445
    %vm468 = vweird.f32 %v461
    %vm469 = vmor %vm467, %vm468
    %v470 = vsel %vm469, %v461, %v466
    %v471 = vrsqrt.pop %v446
    %v472 = vmul.f32 %v471, %v446
    %v473 = vmul.f32 %v472, %v471
    %v474 = vmul.f32 0.5, %v473
    %v475 = vsub.f32 1.5, %v474
    %v476 = vmul.f32 %v471, %v475
    %vm477 = vweird.f32 %v446
    %vm478 = vweird.f32 %v471
    %vm479 = vmor %vm477, %vm478
    %v480 = vsel %vm479, %v471, %v476
    %v481 = vrsqrt.pop %v447
    %v482 = vmul.f32 %v481, %v447
    %v483 = vmul.f32 %v482, %v481
    %v484 = vmul.f32 0.5, %v483
    %v485 = vsub.f32 1.5, %v484
    %v486 = vmul.f32 %v481, %v485
    %vm487 = vweird.f32 %v447
    %vm488 = vweird.f32 %v481
    %vm489 = vmor %vm487, %vm488
    %v490 = vsel %vm489, %v481, %v486
    %v491 = vrsqrt.pop %v448
    %v492 = vmul.f32 %v491, %v448
    %v493 = vmul.f32 %v492, %v491
    %v494 = vmul.f32 0.5, %v493
    %v495 = vsub.f32 1.5, %v494
    %v496 = vmul.f32 %v491, %v495
    %vm497 = vweird.f32 %v448
    %vm498 = vweird.f32 %v491
    %vm499 = vmor %vm497, %vm498
    %v500 = vsel %vm499, %v491, %v496
    %v501 = vrsqrt.pop %v449
    %v502 = vmul.f32 %v501, %v449
    %v503 = vmul.f32 %v502, %v501
    %v504 = vmul.f32 0.5, %v503
    %v505 = vsub.f32 1.5, %v504
    %v506 = vmul.f32 %v501, %v505
    %vm507 = vweird.f32 %v449
    %vm508 = vweird.f32 %v501
    %vm509 = vmor %vm507, %vm508
    %v510 = vsel %vm509, %v501, %v506
    %v511 = vrsqrt.pop %v450
    %v512 = vmul.f32 %v511, %v450
    %v513 = vmul.f32 %v512, %v511
    %v514 = vmul.f32 0.5, %v513
    %v515 = vsub.f32 1.5, %v514
    %v516 = vmul.f32 %v511, %v515
    %vm517 = vweird.f32 %v450
    %vm518 = vweird.f32 %v511
    %vm519 = vmor %vm517, %vm518
    %v520 = vsel %vm519, %v511, %v516
    %v521 = vrsqrt.pop %v451
    %v522 = vmul.f32 %v521, %v451
    %v523 = vmul.f32 %v522, %v521
    %v524 = vmul.f32 0.5, %v523
    %v525 = vsub.f32 1.5, %v524
    %v526 = vmul.f32 %v521, %v525
    %vm527 = vweird.f32 %v451
    %vm528 = vweird.f32 %v521
    %vm529 = vmor %vm527, %vm528
    %v530 = vsel %vm529, %v521, %v526
    %v531 = vrsqrt.pop %v452
    %v532 = vmul.f32 %v531, %v452
    %v533 = vmul.f32 %v532, %v531
    %v534 = vmul.f32 0.5, %v533
    %v535 = vsub.f32 1.5, %v534
    %v536 = vmul.f32 %v531, %v535
    %vm537 = vweird.f32 %v452
    %vm538 = vweird.f32 %v531
    %vm539 = vmor %vm537, %vm538
    %v540 = vsel %vm539, %v531, %v536
    %v541 = vrsqrt.pop %v453
    %v542 = vmul.f32 %v541, %v453
    %v543 = vmul.f32 %v542, %v541
    %v544 = vmul.f32 0.5, %v543
    %v545 = vsub.f32 1.5, %v544
    %v546 = vmul.f32 %v541, %v545
    %vm547 = vweird.f32 %v453
    %vm548 = vweird.f32 %v541
    %vm549 = vmor %vm547, %vm548
    %v550 = vsel %vm549, %v541, %v546
    %v551 = vrsqrt.pop %v454
    %v552 = vmul.f32 %v551, %v454
    %v553 = vmul.f32 %v552, %v551
    %v554 = vmul.f32 0.5, %v553
    %v555 = vsub.f32 1.5, %v554
    %v556 = vmul.f32 %v551, %v555
    %vm557 = vweird.f32 %v454
    %vm558 = vweird.f32 %v551
    %vm559 = vmor %vm557, %vm558
    %v560 = vsel %vm559, %v551, %v556
    %v561 = vrsqrt.pop %v455
    %v562 = vmul.f32 %v561, %v455
    %v563 = vmul.f32 %v562, %v561
    %v564 = vmul.f32 0.5, %v563
    %v565 = vsub.f32 1.5, %v564
    %v566 = vmul.f32 %v561, %v565
    %vm567 = vweird.f32 %v455
    %vm568 = vweird.f32 %v561
    %vm569 = vmor %vm567, %vm568
    %v570 = vsel %vm569, %v561, %v566
    %v571 = vrsqrt.pop %v456
    %v572 = vmul.f32 %v571, %v456
    %v573 = vmul.f32 %v572, %v571
    %v574 = vmul.f32 0.5, %v573
    %v575 = vsub.f32 1.5, %v574
    %v576 = vmul.f32 %v571, %v575
    %vm577 = vweird.f32 %v456
    %vm578 = vweird.f32 %v571
    %vm579 = vmor %vm577, %vm578
    %v580 = vsel %vm579, %v571, %v576
    %v581 = vrsqrt.pop %v457
    %v582 = vmul.f32 %v581, %v457
    %v583 = vmul.f32 %v582, %v581
    %v584 = vmul.f32 0.5, %v583
    %v585 = vsub.f32 1.5, %v584
    %v586 = vmul.f32 %v581, %v585
    %vm587 = vweird.f32 %v457
    %vm588 = vweird.f32 %v581
    %vm589 = vmor %vm587, %vm588
    %v590 = vsel %vm589, %v581, %v586
    %v591 = vrsqrt.pop %v458
    %v592 = vmul.f32 %v591, %v458
    %v593 = vmul.f32 %v592, %v591
    %v594 = vmul.f32 0.5, %v593
    %v595 = vsub.f32 1.5, %v594
    %v596 = vmul.f32 %v591, %v595
    %vm597 = vweird.f32 %v458
    %vm598 = vweird.f32 %v591
    %vm599 = vmor %vm597, %vm598
    %v600 = vsel %vm599, %v591, %v596
    %v601 = vrsqrt.pop %v459
    %v602 = vmul.f32 %v601, %v459
    %v603 = vmul.f32 %v602, %v601
    %v604 = vmul.f32 0.5, %v603
    %v605 = vsub.f32 1.5, %v604
    %v606 = vmul.f32 %v601, %v605
    %vm607 = vweird.f32 %v459
    %vm608 = vweird.f32 %v601
    %vm609 = vmor %vm607, %vm608
    %v610 = vsel %vm609, %v601, %v606
    %v611 = vrsqrt.pop %v460
    %v612 = vmul.f32 %v611, %v460
    %v613 = vmul.f32 %v612, %v611
    %v614 = vmul.f32 0.5, %v613
    %v615 = vsub.f32 1.5, %v614
    %v616 = vmul.f32 %v611, %v615
    %vm617 = vweird.f32 %v460
    %vm618 = vweird.f32 %v611
    %vm619 = vmor %vm617, %vm618
    %v620 = vsel %vm619, %v611, %v616
    %v621 = vmul.f32 %v302, %v470
    %v622 = vmul.f32 %v304, %v480
    %v623 = vmul.f32 %v306, %v490
    %v624 = vmul.f32 %v308, %v500
    %v625 = vmul.f32 %v310, %v510
    %v626 = vmul.f32 %v312, %v520
    %v627 = vmul.f32 %v314, %v530
    %v628 = vmul.f32 %v316, %v540
    %v629 = vmul.f32 %v318, %v550
    %v630 = vmul.f32 %v320, %v560
    %v631 = vmul.f32 %v322, %v570
    %v632 = vmul.f32 %v324, %v580
    %v633 = vmul.f32 %v326, %v590
    %v634 = vmul.f32 %v328, %v600
    %v635 = vmul.f32 %v330, %v610
    %v636 = vmul.f32 %v332, %v620
    %v653 = vlaneseq
    %v654 = vand.u32 %v653, 127
    %v655 = vperm.slane %v621, %v654
    %v656 = vadd.s32 %v654, 4294967288
    %v657 = vperm.slane %v622, %v656
    %vm658 = vcmask 130112
    %v659 = vsel %vm658, %v657, %v655
    %v660 = vadd.s32 %v654, 4294967280
    %v661 = vperm.slane %v623, %v660
    %vm662 = vcmask 195712
    %v663 = vsel %vm662, %v661, %v659
    %v664 = vadd.s32 %v654, 4294967272
    %v665 = vperm.slane %v624, %v664
    %vm666 = vcmask 261312
    %v667 = vsel %vm666, %v665, %v663
    %v668 = vadd.s32 %v654, 4294967264
    %v669 = vperm.slane %v625, %v668
    %vm670 = vcmask 326912
    %v671 = vsel %vm670, %v669, %v667
    %v672 = vadd.s32 %v654, 4294967256
    %v673 = vperm.slane %v626, %v672
    %vm674 = vcmask 392512
    %v675 = vsel %vm674, %v673, %v671
    %v676 = vadd.s32 %v654, 4294967248
    %v677 = vperm.slane %v627, %v676
    %vm678 = vcmask 458112
    %v679 = vsel %vm678, %v677, %v675
    %v680 = vadd.s32 %v654, 4294967240
    %v681 = vperm.slane %v628, %v680
    %vm682 = vcmask 523712
    %v683 = vsel %vm682, %v681, %v679
    %v684 = vadd.s32 %v654, 4294967232
    %v685 = vperm.slane %v629, %v684
    %vm686 = vcmask 589312
    %v687 = vsel %vm686, %v685, %v683
    %v688 = vadd.s32 %v654, 4294967224
    %v689 = vperm.slane %v630, %v688
    %vm690 = vcmask 654912
    %v691 = vsel %vm690, %v689, %v687
    %v692 = vadd.s32 %v654, 4294967216
    %v693 = vperm.slane %v631, %v692
    %vm694 = vcmask 720512
    %v695 = vsel %vm694, %v693, %v691
    %v696 = vadd.s32 %v654, 4294967208
    %v697 = vperm.slane %v632, %v696
    %vm698 = vcmask 786112
    %v699 = vsel %vm698, %v697, %v695
    %v700 = vadd.s32 %v654, 4294967200
    %v701 = vperm.slane %v633, %v700
    %vm702 = vcmask 851712
    %v703 = vsel %vm702, %v701, %v699
    %v704 = vadd.s32 %v654, 4294967192
    %v705 = vperm.slane %v634, %v704
    %vm706 = vcmask 917312
    %v707 = vsel %vm706, %v705, %v703
    %v708 = vadd.s32 %v654, 4294967184
    %v709 = vperm.slane %v635, %v708
    %vm710 = vcmask 982912
    %v711 = vsel %vm710, %v709, %v707
    %v712 = vadd.s32 %v654, 4294967176
    %v713 = vperm.slane %v636, %v712
    %vm714 = vcmask 1048512
    %v715 = vsel %vm714, %v713, %v711
    %717 = vst [vmem:[#allocation2] sm:$0x1] %v715
    // Predicated region
    $region18: #{tpu_custom_call.1} parent=1 // pred_check
      _
    $region19: #{tpu_custom_call.1} parent=1 // pred_check_branch
      %719 = sbr.rel (0) target = $region21
    $region20: #{tpu_custom_call.1} parent=1 // pred_region
      %721 = vsyncadd [#allocation3], 0
      %s723 = sshll.u32 [#allocation2], 4
      %s724 = int_to_ptr.vmem [resolvable:$true] %s723
      %s725 = sshll.u32 %s4, 4
      %s726 = int_to_ptr.hbm [resolvable:$true] %s725
      %728 = dma.vmem_to_hbm [thread:$0]  %s724, 16, %s726, [#allocation3]
    $region21: #{tpu_custom_call.1} parent=1 // pred_fallthru
      _
    // Predicated region
    $region22: #{tpu_custom_call.1} parent=1 // pred_check
      _
    $region23: #{tpu_custom_call.1} parent=1 // pred_check_branch
      %730 = sbr.rel (0) target = $region25
    $region24: #{tpu_custom_call.1} parent=1 // pred_region
      %732 = dma.done [#allocation3], 16
    $region25: #{tpu_custom_call.1} parent=1 // pred_fallthru
      _
    %733 = vsyncpa [#allocation3], 1

</llo_original>
